<compile_context>
chip_gen: v5e
topology: v5e:2x2
jax: 0.10.0
libtpu: 0.0.40
codegen_flags: <defaults>
</compile_context>

<pallas_src>
import jax
import jax.numpy as jnp
from jax import lax
from jax.experimental import pallas as pl
from jax.experimental.pallas import tpu as pltpu

LANE = 128


def _make_kernel(n_chunks: int, ch: int):
    """Kernel factory; n_chunks/ch are static Python ints baked into the body."""
    unroll = n_chunks <= 4

    def kernel(xt_ref, w0_ref, b0_ref, w1_ref, b1_ref, w2_ref, b2_ref, o_ref):
        # Hoist all parameter loads above the chunk loop.
        w0 = w0_ref[...]   # (H0, in_d)
        w1 = w1_ref[...]   # (H1, H0)
        b0 = b0_ref[...]   # (H0, 1)
        b1 = b1_ref[...]   # (H1, 1)
        w2 = w2_ref[...]   # (H1, 1)  final layer weight as a column
        b2 = b2_ref[...]   # (1, 1)

        def body(c, carry):
            off = pl.multiple_of(c * ch, LANE)
            xt = xt_ref[:, pl.ds(off, ch)]                      # (in_d, ch)
            # Layer 0: (H0, in_d) @ (in_d, ch) + (H0, 1) -> (H0, ch), ReLU
            h = jnp.dot(w0, xt, preferred_element_type=jnp.float32) + b0
            h = jnp.maximum(h, 0.0)
            # Layer 1: (H1, H0) @ (H0, ch) + (H1, 1) -> (H1, ch), ReLU
            h = jnp.dot(w1, h, preferred_element_type=jnp.float32) + b1
            h = jnp.maximum(h, 0.0)
            # Layer 2: Linear(H1 -> 1) as VPU multiply + sublane reduce.
            y = jnp.sum(h * w2, axis=0, keepdims=True) + b2     # (1, ch)
            # ELU (alpha=1), numerically safe, then + 1.0; lane-dense store.
            o_ref[:, pl.ds(off, ch)] = (
                jnp.where(y > 0.0, y, jnp.exp(jnp.minimum(y, 0.0)) - 1.0) + 1.0)
            return carry

        lax.fori_loop(0, n_chunks, body, 0, unroll=unroll)

    return kernel


def integrand_nn_pallas(x, params, *, tb=8192, x_transposed=False):
    """IntegrandNN_v1 forward.

    x: (B, in_d) f32, or (in_d, B) if x_transposed=True (lets UMNN callers
       hoist the transpose out of the quadrature loop).
    params: nn.Linear-layout weights w{0,1,2} (out, in) and biases b{0,1,2} (out,).
    Returns (B, 1) f32.
    """
    if x_transposed:
        in_d, B = x.shape
    else:
        B, in_d = x.shape

    w0, w1, w2 = params["w0"], params["w1"], params["w2"]
    b0, b1, b2 = params["b0"], params["b1"], params["b2"]
    H0, H1 = w0.shape[0], w1.shape[0]

    # Batch tile: lane-dense (multiple of 128), as large as requested, but
    # capped at half the (lane-rounded) batch so the grid keeps >= 2 blocks
    # when possible (v7x megacore sharding via dimension_semantics).
    tb_req = max(LANE, (int(tb) // LANE) * LANE)
    Bp_lane = pl.cdiv(B, LANE) * LANE
    if Bp_lane >= 2 * LANE:
        half = max(LANE, (Bp_lane // (2 * LANE)) * LANE)
        tb_eff = min(tb_req, half)
    else:
        tb_eff = LANE
    Bp = pl.cdiv(B, tb_eff) * tb_eff

    # Inner chunk width: <= 512 lanes to bound live vregs inside the kernel.
    if tb_eff <= 512:
        ch = tb_eff
    else:
        ch = next(c for c in (512, 256, 128) if tb_eff % c == 0)
    n_chunks = tb_eff // ch

    # Batch on lanes. jnp.pad is a single cheap fused op (vs zeros + scatter);
    # padded lanes are zeros -> finite outputs, discarded by the final slice.
    xt = x if x_transposed else x.T
    if Bp != B:
        xt = jnp.pad(xt, ((0, 0), (0, Bp - B)))
    xt = xt.astype(jnp.float32)
    # TODO(synk): for repeated UMNN quadrature evaluations, keep x resident in
    # (in_d, B) layout upstream so this transpose/pad never re-runs.

    # Column-vector biases / final weight so they broadcast along lanes.
    b0c = b0.reshape(H0, 1)
    b1c = b1.reshape(H1, 1)
    w2c = w2.reshape(H1, 1)
    b2c = b2.reshape(1, 1)

    grid = (Bp // tb_eff,)
    full = lambda shape: pl.BlockSpec(shape, lambda i: (0, 0))

    flops = 2 * Bp * (in_d * H0 + H0 * H1 + H1)
    bytes_accessed = 4 * (in_d * Bp + Bp
                          + sum(int(params[k].size) for k in params))

    out = pl.pallas_call(
        _make_kernel(n_chunks, ch),
        out_shape=jax.ShapeDtypeStruct((1, Bp), jnp.float32),
        grid_spec=pltpu.PrefetchScalarGridSpec(
            num_scalar_prefetch=0,
            grid=grid,
            in_specs=[
                pl.BlockSpec((in_d, tb_eff), lambda i: (0, i)),  # x^T tile
                full((H0, in_d)),   # w0
                full((H0, 1)),      # b0
                full((H1, H0)),     # w1
                full((H1, 1)),      # b1
                full((H1, 1)),      # w2 (column)
                full((1, 1)),       # b2
            ],
            out_specs=pl.BlockSpec((1, tb_eff), lambda i: (0, i)),
        ),
        compiler_params=pltpu.CompilerParams(
            dimension_semantics=("parallel",)),
        cost_estimate=pl.CostEstimate(
            flops=flops, transcendentals=Bp, bytes_accessed=bytes_accessed),
    )(xt, w0, b0c, w1, b1c, w2c, b2c)

    # Back to the module's (B, 1) output; wrapper-side slice/reshape is free.
    return out[0, :B].reshape(B, 1)


def init_params(key, in_d, hidden_layers):
    """Deterministic init matching nn.Linear shapes: weight (out, in), bias (out,)."""
    hs = [in_d] + list(hidden_layers) + [1]
    params = {}
    for idx, (fan_in, fan_out) in enumerate(zip(hs, hs[1:])):
        key, kw, kb = jax.random.split(key, 3)
        bound = 1.0 / float(fan_in) ** 0.5
        params[f"w{idx}"] = jax.random.uniform(
            kw, (fan_out, fan_in), jnp.float32, minval=-bound, maxval=bound)
        params[f"b{idx}"] = jax.random.uniform(
            kb, (fan_out,), jnp.float32, minval=-bound, maxval=bound)
    return params


def integrand_nn_ref(x, params):
    h = jnp.maximum(x @ params["w0"].T + params["b0"], 0.0)
    h = jnp.maximum(h @ params["w1"].T + params["b1"], 0.0)
    y = h @ params["w2"].T + params["b2"]
    return jnp.where(y > 0.0, y, jnp.exp(jnp.minimum(y, 0.0)) - 1.0) + 1.0


if __name__ == "__main__":
    in_d = 4
    hidden_layers = [32, 32]

    key = jax.random.PRNGKey(0)
    key, kx1, kx2, kx3 = jax.random.split(key, 4)
    params = init_params(key, in_d, hidden_layers)

    # Tiny batch: pad 16 -> one 128-lane tile, single chunk.
    x_small = jax.random.normal(kx1, (16, in_d), dtype=jnp.float32)
    out_small = jax.block_until_ready(integrand_nn_pallas(x_small, params))
    assert out_small.shape == (16, 1)
    assert jnp.allclose(out_small, integrand_nn_ref(x_small, params),
                        atol=1e-5, rtol=1e-5)

    # Ragged batch: multi-block grid + tail padding.
    x_mid = jax.random.normal(kx2, (300, in_d), dtype=jnp.float32)
    out_mid = jax.block_until_ready(integrand_nn_pallas(x_mid, params, tb=256))
    assert out_mid.shape == (300, 1)
    assert jnp.allclose(out_mid, integrand_nn_ref(x_mid, params),
                        atol=1e-5, rtol=1e-5)

    # Larger batch: >= 2 grid blocks (v7x megacore) + inner chunk loop.
    x_big = jax.random.normal(kx3, (2048, in_d), dtype=jnp.float32)
    out_big = jax.block_until_ready(integrand_nn_pallas(x_big, params))
    assert out_big.shape == (2048, 1)
    assert jnp.allclose(out_big, integrand_nn_ref(x_big, params),
                        atol=1e-5, rtol=1e-5)

    # Pre-transposed fast path (transpose hoisted out of the quadrature loop).
    out_t = jax.block_until_ready(
        integrand_nn_pallas(x_big.T, params, x_transposed=True))
    assert jnp.allclose(out_t, out_big, atol=1e-5, rtol=1e-5)

    print("KERNEL_OK")
</pallas_src>

<mosaic_0001>
module attributes {stable_mosaic.version = 11 : i64} {
  func.func @kernel(%arg0: i32, %arg1: memref<4x128xf32, #tpu.memory_space<vmem>>, %arg2: memref<32x4xf32, #tpu.memory_space<vmem>>, %arg3: memref<32x1xf32, #tpu.memory_space<vmem>>, %arg4: memref<32x32xf32, #tpu.memory_space<vmem>>, %arg5: memref<32x1xf32, #tpu.memory_space<vmem>>, %arg6: memref<32x1xf32, #tpu.memory_space<vmem>>, %arg7: memref<1x1xf32, #tpu.memory_space<vmem>>, %arg8: memref<1x128xf32, #tpu.memory_space<vmem>>) attributes {dimension_semantics = [#tpu.dimension_semantics<parallel>], iteration_bounds = array<i64: 1>, scalar_prefetch = 0 : i64, scratch_operands = 0 : i64, tpu.core_type = #tpu.core_type<tc>, window_params = [{transform_indices = @transform_0, window_bounds = array<i64: 4, 128>}, {pipeline_mode = #tpu.pipeline_mode<synchronous>, transform_indices = @transform_1, window_bounds = array<i64: 32, 4>}, {pipeline_mode = #tpu.pipeline_mode<synchronous>, transform_indices = @transform_2, window_bounds = array<i64: 32, 1>}, {pipeline_mode = #tpu.pipeline_mode<synchronous>, transform_indices = @transform_3, window_bounds = array<i64: 32, 32>}, {pipeline_mode = #tpu.pipeline_mode<synchronous>, transform_indices = @transform_4, window_bounds = array<i64: 32, 1>}, {pipeline_mode = #tpu.pipeline_mode<synchronous>, transform_indices = @transform_5, window_bounds = array<i64: 32, 1>}, {pipeline_mode = #tpu.pipeline_mode<synchronous>, transform_indices = @transform_6, window_bounds = array<i64: 1, 1>}, {transform_indices = @transform_7, window_bounds = array<i64: 1, 128>}]} {
    %c0 = arith.constant 0 : index
    %c0_0 = arith.constant 0 : index
    %0 = vector.load %arg2[%c0, %c0_0] : memref<32x4xf32, #tpu.memory_space<vmem>>, vector<32x4xf32>
    %c0_1 = arith.constant 0 : index
    %c0_2 = arith.constant 0 : index
    %1 = vector.load %arg4[%c0_1, %c0_2] : memref<32x32xf32, #tpu.memory_space<vmem>>, vector<32x32xf32>
    %c0_3 = arith.constant 0 : index
    %c0_4 = arith.constant 0 : index
    %2 = vector.load %arg3[%c0_3, %c0_4] : memref<32x1xf32, #tpu.memory_space<vmem>>, vector<32x1xf32>
    %c0_5 = arith.constant 0 : index
    %c0_6 = arith.constant 0 : index
    %3 = vector.load %arg5[%c0_5, %c0_6] : memref<32x1xf32, #tpu.memory_space<vmem>>, vector<32x1xf32>
    %c0_7 = arith.constant 0 : index
    %c0_8 = arith.constant 0 : index
    %4 = vector.load %arg6[%c0_7, %c0_8] : memref<32x1xf32, #tpu.memory_space<vmem>>, vector<32x1xf32>
    %c0_9 = arith.constant 0 : index
    %c0_10 = arith.constant 0 : index
    %5 = vector.load %arg7[%c0_9, %c0_10] : memref<1x1xf32, #tpu.memory_space<vmem>>, vector<1x1xf32>
    %c0_i32 = arith.constant 0 : i32
    %c128_i32 = arith.constant 128 : i32
    %6 = arith.muli %c0_i32, %c128_i32 : i32
    %7 = tpu.assume_multiple %6, 128 : i32
    %c0_11 = arith.constant 0 : index
    %8 = arith.index_cast %7 : i32 to index
    %9 = vector.load %arg1[%c0_11, %8] : memref<4x128xf32, #tpu.memory_space<vmem>>, vector<4x128xf32>
    %cst = arith.constant dense<0.000000e+00> : vector<32x128xf32>
    %10 = tpu.matmul %0, %9, %cst {dimension_numbers = #tpu.dot_dimension_numbers<[1], [0], [0], [1], [0, 0, 1, 1], [], []>} : vector<32x4xf32>, vector<4x128xf32>, vector<32x128xf32> -> vector<32x128xf32>
    %11 = vector.broadcast %2 : vector<32x1xf32> to vector<32x128xf32>
    %12 = arith.addf %10, %11 : vector<32x128xf32>
    %cst_12 = arith.constant 0.000000e+00 : f32
    %13 = vector.broadcast %cst_12 : f32 to vector<32x128xf32>
    %14 = arith.maximumf %12, %13 : vector<32x128xf32>
    %cst_13 = arith.constant dense<0.000000e+00> : vector<32x128xf32>
    %15 = tpu.matmul %1, %14, %cst_13 {dimension_numbers = #tpu.dot_dimension_numbers<[1], [0], [0], [1], [0, 0, 1, 1], [], []>} : vector<32x32xf32>, vector<32x128xf32>, vector<32x128xf32> -> vector<32x128xf32>
    %16 = vector.broadcast %3 : vector<32x1xf32> to vector<32x128xf32>
    %17 = arith.addf %15, %16 : vector<32x128xf32>
    %cst_14 = arith.constant 0.000000e+00 : f32
    %18 = vector.broadcast %cst_14 : f32 to vector<32x128xf32>
    %19 = arith.maximumf %17, %18 : vector<32x128xf32>
    %20 = vector.broadcast %4 : vector<32x1xf32> to vector<32x128xf32>
    %21 = arith.mulf %19, %20 : vector<32x128xf32>
    %cst_15 = arith.constant dense<0.000000e+00> : vector<128xf32>
    %22 = vector.multi_reduction <add>, %21, %cst_15 [0] : vector<32x128xf32> to vector<128xf32>
    %23 = vector.shape_cast %22 : vector<128xf32> to vector<1x128xf32>
    %24 = vector.broadcast %5 : vector<1x1xf32> to vector<1x128xf32>
    %25 = arith.addf %23, %24 : vector<1x128xf32>
    %cst_16 = arith.constant 0.000000e+00 : f32
    %26 = vector.broadcast %cst_16 : f32 to vector<1x128xf32>
    %27 = arith.cmpf ogt, %25, %26 : vector<1x128xf32>
    %cst_17 = arith.constant 0.000000e+00 : f32
    %28 = vector.broadcast %cst_17 : f32 to vector<1x128xf32>
    %29 = arith.minimumf %25, %28 : vector<1x128xf32>
    %30 = math.exp %29 : vector<1x128xf32>
    %cst_18 = arith.constant 1.000000e+00 : f32
    %31 = vector.broadcast %cst_18 : f32 to vector<1x128xf32>
    %32 = arith.subf %30, %31 : vector<1x128xf32>
    %33 = arith.select %27, %25, %32 : vector<1x128xi1>, vector<1x128xf32>
    %cst_19 = arith.constant 1.000000e+00 : f32
    %34 = vector.broadcast %cst_19 : f32 to vector<1x128xf32>
    %35 = arith.addf %33, %34 : vector<1x128xf32>
    %c0_20 = arith.constant 0 : index
    %36 = arith.index_cast %7 : i32 to index
    %37 = vector.load %arg8[%c0_20, %36] : memref<1x128xf32, #tpu.memory_space<vmem>>, vector<1x128xf32>
    tpu.vector_store %arg8[%c0_20, %36], %35 {strides = array<i32>} : memref<1x128xf32, #tpu.memory_space<vmem>>, vector<1x128xf32>,
    %c1_i32 = arith.constant 1 : i32
    return
  }
  func.func @transform_0(%arg0: i32) -> (i32, i32) {
    %c0_i32 = arith.constant 0 : i32
    %c0_i32_0 = arith.constant 0 : i32
    return %c0_i32, %arg0 : i32, i32
  }
  func.func @transform_1(%arg0: i32) -> (i32, i32) {
    %c0_i32 = arith.constant 0 : i32
    %c0_i32_0 = arith.constant 0 : i32
    %c0_i32_1 = arith.constant 0 : i32
    return %c0_i32, %c0_i32_0 : i32, i32
  }
  func.func @transform_2(%arg0: i32) -> (i32, i32) {
    %c0_i32 = arith.constant 0 : i32
    %c0_i32_0 = arith.constant 0 : i32
    %c0_i32_1 = arith.constant 0 : i32
    return %c0_i32, %c0_i32_0 : i32, i32
  }
  func.func @transform_3(%arg0: i32) -> (i32, i32) {
    %c0_i32 = arith.constant 0 : i32
    %c0_i32_0 = arith.constant 0 : i32
    %c0_i32_1 = arith.constant 0 : i32
    return %c0_i32, %c0_i32_0 : i32, i32
  }
  func.func @transform_4(%arg0: i32) -> (i32, i32) {
    %c0_i32 = arith.constant 0 : i32
    %c0_i32_0 = arith.constant 0 : i32
    %c0_i32_1 = arith.constant 0 : i32
    return %c0_i32, %c0_i32_0 : i32, i32
  }
  func.func @transform_5(%arg0: i32) -> (i32, i32) {
    %c0_i32 = arith.constant 0 : i32
    %c0_i32_0 = arith.constant 0 : i32
    %c0_i32_1 = arith.constant 0 : i32
    return %c0_i32, %c0_i32_0 : i32, i32
  }
  func.func @transform_6(%arg0: i32) -> (i32, i32) {
    %c0_i32 = arith.constant 0 : i32
    %c0_i32_0 = arith.constant 0 : i32
    %c0_i32_1 = arith.constant 0 : i32
    return %c0_i32, %c0_i32_0 : i32, i32
  }
  func.func @transform_7(%arg0: i32) -> (i32, i32) {
    %c0_i32 = arith.constant 0 : i32
    %c0_i32_0 = arith.constant 0 : i32
    return %c0_i32, %arg0 : i32, i32
  }
}

</mosaic_0001>

<llo_original>
// kernel: tpu_custom_call.1
$region0: #{tpu_custom_call.1}
  #allocation0 [shape = 'u32[]', space=smem, size = 0x4, offset = 0x4, fixed_abs, tag = 'smem constant byte address 0x4 - core index']
  #allocation1 [shape = 'u32[72,128]{1,0:T(1,128)}', space=vmem, size = 0x9000, scoped, tag = 'internal scratch']
  #allocation2 [shape = 'f32[1,1]{1,0:T(1,128)S(1)}', space=vmem, size = 0x200, scoped, tag = 'scoped memory for tpu_custom_call.1']
  %s0 = inlined_call_operand.vmem [shape: f32[4,128], index: 0, kind: input, shape index: {}]
  %s1 = inlined_call_operand.vmem [shape: f32[32,4], index: 1, kind: input, shape index: {}]
  %s2 = inlined_call_operand.vmem [shape: f32[32,1], index: 2, kind: input, shape index: {}]
  %s3 = inlined_call_operand.vmem [shape: f32[32,32], index: 3, kind: input, shape index: {}]
  %s4 = inlined_call_operand.vmem [shape: f32[32,1], index: 4, kind: input, shape index: {}]
  %s5 = inlined_call_operand.vmem [shape: f32[32,1], index: 5, kind: input, shape index: {}]
  %s6 = inlined_call_operand.<no memory space> [shape: f32[1,1], index: 6, kind: input, shape index: {}]
  %s7 = inlined_call_operand.hbm [shape: f32[1,128], index: 7, kind: output, shape index: {}]
  %s8 = sld [smem:[#allocation0]]
  $region38: #{tpu_custom_call.1} parent=0
    _
  %s10 = ssub.s32 1, %s8
  %s11 = scalar_select 0, %s10, %s8
  %v12 = vstv %s6
  %13 = vst [vmem:[#allocation2] sm:$0x1] %v12
  $region1: #{tpu_custom_call.1} parent=0
    #allocation3 [shape = 'u8[512]{0}', space=vmem, size = 0x400, scoped, tag = 'output window, operand 0, single buffered']
    #allocation4 [shape = 's32[1]{0}', space=sflag, size = 0x4, scoped, tag = 'scoped memory for tpu_custom_call.1']
    %14 = vsyncpa [#allocation4], 0
    // Predicated region
    $region2: #{tpu_custom_call.1} parent=1 // pred_check
      _
    $region3: #{tpu_custom_call.1} parent=1 // pred_check_branch
      %16 = sbr.rel (0) target = $region5
    $region4: #{tpu_custom_call.1} parent=1 // pred_region
      _
    $region5: #{tpu_custom_call.1} parent=1 // pred_fallthru
      _
    // Predicated region
    $region6: #{tpu_custom_call.1} parent=1 // pred_check
      _
    $region7: #{tpu_custom_call.1} parent=1 // pred_check_branch
      %18 = sbr.rel (0) target = $region9
    $region8: #{tpu_custom_call.1} parent=1 // pred_region
      _
    $region9: #{tpu_custom_call.1} parent=1 // pred_fallthru
      _
    // Predicated region
    $region10: #{tpu_custom_call.1} parent=1 // pred_check
      _
    $region11: #{tpu_custom_call.1} parent=1 // pred_check_branch
      %20 = sbr.rel (0) target = $region13
    $region12: #{tpu_custom_call.1} parent=1 // pred_region
      _
    $region13: #{tpu_custom_call.1} parent=1 // pred_fallthru
      _
    // Predicated region
    $region14: #{tpu_custom_call.1} parent=1 // pred_check
      _
    $region15: #{tpu_custom_call.1} parent=1 // pred_check_branch
      %22 = sbr.rel (0) target = $region17
    $region16: #{tpu_custom_call.1} parent=1 // pred_region
      _
    $region17: #{tpu_custom_call.1} parent=1 // pred_fallthru
      _
    // Predicated region
    $region18: #{tpu_custom_call.1} parent=1 // pred_check
      _
    $region19: #{tpu_custom_call.1} parent=1 // pred_check_branch
      %24 = sbr.rel (0) target = $region21
    $region20: #{tpu_custom_call.1} parent=1 // pred_region
      _
    $region21: #{tpu_custom_call.1} parent=1 // pred_fallthru
      _
    // Predicated region
    $region22: #{tpu_custom_call.1} parent=1 // pred_check
      _
    $region23: #{tpu_custom_call.1} parent=1 // pred_check_branch
      %26 = sbr.rel (0) target = $region25
    $region24: #{tpu_custom_call.1} parent=1 // pred_region
      _
    $region25: #{tpu_custom_call.1} parent=1 // pred_fallthru
      _
    // Predicated region
    $region26: #{tpu_custom_call.1} parent=1 // pred_check
      _
    $region27: #{tpu_custom_call.1} parent=1 // pred_check_branch
      %28 = sbr.rel (0) target = $region29
    $region28: #{tpu_custom_call.1} parent=1 // pred_region
      _
    $region29: #{tpu_custom_call.1} parent=1 // pred_fallthru
      _
    %v29 = vld [vmem:[%s1] sm:$0xff]
    %v30 = vld [vmem:[%s1 + $0x8] sm:$0xff]
    %v31 = vld [vmem:[%s1 + $0x10] sm:$0xff]
    %v32 = vld [vmem:[%s1 + $0x18] sm:$0xff]
    %v33 = vld [vmem:[%s3] sm:$0xff]
    %v34 = vld [vmem:[%s3 + $0x8] sm:$0xff]
    %v35 = vld [vmem:[%s3 + $0x10] sm:$0xff]
    %v36 = vld [vmem:[%s3 + $0x18] sm:$0xff]
    %v37 = vld [vmem:[%s2] sm:$0xff]
    %v38 = vld [vmem:[%s2 + $0x8] sm:$0xff]
    %v39 = vld [vmem:[%s2 + $0x10] sm:$0xff]
    %v40 = vld [vmem:[%s2 + $0x18] sm:$0xff]
    %v41 = vld [vmem:[%s4] sm:$0xff]
    %v42 = vld [vmem:[%s4 + $0x8] sm:$0xff]
    %v43 = vld [vmem:[%s4 + $0x10] sm:$0xff]
    %v44 = vld [vmem:[%s4 + $0x18] sm:$0xff]
    %v45 = vld [vmem:[%s5] sm:$0xff]
    %v46 = vld [vmem:[%s5 + $0x8] sm:$0xff]
    %v47 = vld [vmem:[%s5 + $0x10] sm:$0xff]
    %v48 = vld [vmem:[%s5 + $0x18] sm:$0xff]
    %v49 = vld [vmem:[#allocation2] sm:$0x1]
    %v50 = vld [vmem:[%s0] sm:$0xf]
    %52 = vset.pattern.permute.xlu0 0
    %53 = vperm.xlu0 %52, %v37
    %v54 = vpop.permute.xlu0 %53
    %57 = vset.pattern.permute.xlu0 0
    %58 = vperm.xlu0 %57, %v38
    %v59 = vpop.permute.xlu0 %58
    %62 = vset.pattern.permute.xlu0 0
    %63 = vperm.xlu0 %62, %v39
    %v64 = vpop.permute.xlu0 %63
    %67 = vset.pattern.permute.xlu0 0
    %68 = vperm.xlu0 %67, %v40
    %v69 = vpop.permute.xlu0 %68
    %vm71 = vcmask 31744
    %v73 = vsel %vm71, %v29, 0
    %v76 = vsel %vm71, %v30, 0
    %v79 = vsel %vm71, %v31, 0
    %v82 = vsel %vm71, %v32, 0
    %vm84 = vcmask 1043456
    %v86 = vsel %vm84, %v50, 0
    %88 = vmatpush.msra.mxu0 0.0
    %89 = vmatpush.msra.mxu0 0.0
    %90 = vmatpush.msra.mxu0 0.0
    %91 = vmatpush.msra.mxu0 0.0
    %92 = vmatpush.msra.mxu0 0.0
    %93 = vmatpush.msra.mxu0 0.0
    %94 = vmatpush.msra.mxu0 0.0
    %95 = vmatpush.msra.mxu0 0.0
    %96 = vmatpush.msra.mxu0 0.0
    %97 = vmatpush.msra.mxu0 0.0
    %98 = vmatpush.msra.mxu0 0.0
    %99 = vmatpush.msra.mxu0 0.0
    %100 = vmatpush.msra.mxu0 0.0
    %101 = vmatpush.msra.mxu0 0.0
    %102 = vmatpush.msra.mxu0 0.0
    %103 = vmatpush.msra.mxu0 %v86
    %104 = vmatmul.f32.gmra.mxu0 %v73
    %v105 = vpop.f32.mrf.mxu0
    %v106 = vadd.f32 %v54, %v105
    %107 = vmatmul.f32.gmra.mxu0 %v76
    %v108 = vpop.f32.mrf.mxu0
    %v109 = vadd.f32 %v59, %v108
    %110 = vmatmul.f32.gmra.mxu0 %v79
    %v111 = vpop.f32.mrf.mxu0
    %v112 = vadd.f32 %v64, %v111
    %113 = vmatmul.f32.gmra.mxu0 %v82
    %v114 = vpop.f32.mrf.mxu0
    %v115 = vadd.f32 %v69, %v114
    %116 = vdwg.mxu0
    %v117 = vmax.f32 %v106, 0.0
    %v118 = vmax.f32 %v109, 0.0
    %v119 = vmax.f32 %v112, 0.0
    %v120 = vmax.f32 %v115, 0.0
    %122 = vset.pattern.permute.xlu0 0
    %123 = vperm.xlu0 %122, %v41
    %v124 = vpop.permute.xlu0 %123
    %127 = vset.pattern.permute.xlu0 0
    %128 = vperm.xlu0 %127, %v42
    %v129 = vpop.permute.xlu0 %128
    %132 = vset.pattern.permute.xlu0 0
    %133 = vperm.xlu0 %132, %v43
    %v134 = vpop.permute.xlu0 %133
    %137 = vset.pattern.permute.xlu0 0
    %138 = vperm.xlu0 %137, %v44
    %v139 = vpop.permute.xlu0 %138
    %vm141 = vcmask 261120
    %v143 = vsel %vm141, %v33, 0
    %v146 = vsel %vm141, %v34, 0
    %v149 = vsel %vm141, %v35, 0
    %v152 = vsel %vm141, %v36, 0
    %154 = vmatpush.msra.mxu0 0.0
    %155 = vmatpush.msra.mxu0 0.0
    %156 = vmatpush.msra.mxu0 0.0
    %157 = vmatpush.msra.mxu0 0.0
    %158 = vmatpush.msra.mxu0 0.0
    %159 = vmatpush.msra.mxu0 0.0
    %160 = vmatpush.msra.mxu0 0.0
    %161 = vmatpush.msra.mxu0 0.0
    %162 = vmatpush.msra.mxu0 0.0
    %163 = vmatpush.msra.mxu0 0.0
    %164 = vmatpush.msra.mxu0 0.0
    %165 = vmatpush.msra.mxu0 0.0
    %166 = vmatpush.msra.mxu0 %v120
    %167 = vmatpush.msra.mxu0 %v119
    %168 = vmatpush.msra.mxu0 %v118
    %169 = vmatpush.msra.mxu0 %v117
    %170 = vmatmul.f32.gmra.mxu0 %v143
    %v171 = vpop.f32.mrf.mxu0
    %v172 = vadd.f32 %v124, %v171
    %173 = vmatmul.f32.gmra.mxu0 %v146
    %v174 = vpop.f32.mrf.mxu0
    %v175 = vadd.f32 %v129, %v174
    %176 = vmatmul.f32.gmra.mxu0 %v149
    %v177 = vpop.f32.mrf.mxu0
    %v178 = vadd.f32 %v134, %v177
    %179 = vmatmul.f32.gmra.mxu0 %v152
    %v180 = vpop.f32.mrf.mxu0
    %v181 = vadd.f32 %v139, %v180
    %182 = vdwg.mxu0
    %v183 = vmax.f32 %v172, 0.0
    %v184 = vmax.f32 %v175, 0.0
    %v185 = vmax.f32 %v178, 0.0
    %v186 = vmax.f32 %v181, 0.0
    %188 = vset.pattern.permute.xlu0 0
    %189 = vperm.xlu0 %188, %v45
    %v190 = vpop.permute.xlu0 %189
    %193 = vset.pattern.permute.xlu0 0
    %194 = vperm.xlu0 %193, %v46
    %v195 = vpop.permute.xlu0 %194
    %198 = vset.pattern.permute.xlu0 0
    %199 = vperm.xlu0 %198, %v47
    %v200 = vpop.permute.xlu0 %199
    %203 = vset.pattern.permute.xlu0 0
    %204 = vperm.xlu0 %203, %v48
    %v205 = vpop.permute.xlu0 %204
    %v207 = vmul.f32 %v183, %v190
    %v208 = vmul.f32 %v184, %v195
    %v209 = vmul.f32 %v185, %v200
    %v210 = vmul.f32 %v186, %v205
    %v211 = vadd.f32 %v207, %v208
    %v212 = vadd.f32 %v211, %v209
    %v213 = vadd.f32 %v212, %v210
    %v214 = vrot.slane %v213, 4
    %v215 = vadd.f32 %v213, %v214
    %v216 = vrot.slane %v215, 2
    %v217 = vadd.f32 %v215, %v216
    %v218 = vrot.slane %v217, 1
    %v219 = vadd.f32 %v217, %v218
    %221 = vset.pattern.permute.xlu0 0
    %222 = vperm.xlu0 %221, %v49
    %v223 = vpop.permute.xlu0 %222
    %v225 = vperm.slane %v223, 0
    %v226 = vadd.f32 %v219, %v225
    %vm227 = vcmp.gt.f32.partialorder %v226, 0.0
    %v228 = vmin.f32 %v226, 0.0
    %v229 = vmul.f32 %v228, 1.442695
    %v230 = vpow.pop %v229
    %v231 = vsub.f32 %v230, 1.0
    %v232 = vsel %vm227, %v226, %v231
    %v233 = vadd.f32 %v232, 1.0
    %234 = vst [vmem:[#allocation3] sm:$0x1] %v233
    // Predicated region
    $region30: #{tpu_custom_call.1} parent=1 // pred_check
      _
    $region31: #{tpu_custom_call.1} parent=1 // pred_check_branch
      %236 = sbr.rel (0) target = $region33
    $region32: #{tpu_custom_call.1} parent=1 // pred_region
      %238 = vsyncadd [#allocation4], 0
      %s240 = sshll.u32 [#allocation3], 4
      %s241 = int_to_ptr.vmem [resolvable:$true] %s240
      %s242 = sshll.u32 %s7, 4
      %s243 = int_to_ptr.hbm [resolvable:$true] %s242
      %245 = dma.vmem_to_hbm [thread:$0]  %s241, 16, %s243, [#allocation4]
    $region33: #{tpu_custom_call.1} parent=1 // pred_fallthru
      _
    // Predicated region
    $region34: #{tpu_custom_call.1} parent=1 // pred_check
      _
    $region35: #{tpu_custom_call.1} parent=1 // pred_check_branch
      %247 = sbr.rel (0) target = $region37
    $region36: #{tpu_custom_call.1} parent=1 // pred_region
      %249 = dma.done [#allocation4], 16
    $region37: #{tpu_custom_call.1} parent=1 // pred_fallthru
      _
    %250 = vsyncpa [#allocation4], 1

</llo_original>
